<compile_context>
chip_gen: v6e
topology: v6e:2x2x1
jax: 0.10.0
libtpu: 0.0.40
codegen_flags: <defaults>
</compile_context>

<pallas_src>
import jax
import jax.numpy as jnp
from jax.experimental import pallas as pl
from jax.experimental.pallas import tpu as pltpu

_MIB = 1 << 20


# ---------------------------------------------------------------------------
# VMEM budgeting (generation-aware).
# ---------------------------------------------------------------------------
def _vmem_capacity_bytes():
    try:
        cap = int(pltpu.get_tpu_info().vmem_capacity_bytes)
        if cap > 0:
            return cap
    except Exception:
        pass
    return 64 * _MIB  # conservative fallback (v7x-sized)


def _default_budget(capacity):
    # Leave headroom for Mosaic internal scratch / semaphores.
    return max(capacity - 16 * _MIB, 16 * _MIB)


def _mosaic_params(need_bytes, dimension_semantics, capacity):
    limit = int(max(int(need_bytes) + 4 * _MIB, 32 * _MIB))
    limit = min(limit, capacity - 8 * _MIB)
    return pltpu.CompilerParams(
        dimension_semantics=dimension_semantics,
        vmem_limit_bytes=limit,
    )


# ---------------------------------------------------------------------------
# Single-pass fused kernel: pool + MLP + gate for a batch tile per grid step.
# ---------------------------------------------------------------------------
def _fused_kernel(x_ref, w1t_ref, b1_ref, w2t_ref, b2_ref, o_ref):
    # x_ref: (Bt, C, HW) in the input dtype; no f32 copy of the tile is made.
    x = x_ref[...]
    bt = x.shape[0]
    hw = x.shape[-1]

    # Adaptive avg/max pool == reductions over the spatial (lane) axis,
    # accumulated in f32.
    avg = jnp.sum(x, axis=-1, dtype=jnp.float32) / jnp.float32(hw)   # (Bt, C)
    mx = jnp.max(x, axis=-1).astype(jnp.float32)                     # (Bt, C)
    pooled = jnp.concatenate([avg, mx], axis=0)                      # (2*Bt, C)

    # Shared MLP on the whole pooled block at once. Weights arrive already
    # transposed to (in, out) so these are plain matmuls with K=C on the lane
    # axis of `pooled` -- no in-kernel relayout.
    w1t = w1t_ref[...].astype(jnp.float32)                           # (C, Cr)
    b1 = b1_ref[...].astype(jnp.float32)                             # (1, Cr)
    w2t = w2t_ref[...].astype(jnp.float32)                           # (Cr, C)
    b2 = b2_ref[...].astype(jnp.float32)                             # (1, C)

    h = jnp.dot(pooled, w1t, preferred_element_type=jnp.float32) + b1
    h = jnp.maximum(h, 0.0)                                          # (2*Bt, Cr)
    y = jnp.dot(h, w2t, preferred_element_type=jnp.float32) + b2     # (2*Bt, C)

    att = jax.nn.sigmoid(y[:bt] + y[bt:])                            # (Bt, C) f32
    # Gate in the input dtype (single downcast of the per-channel scale).
    o_ref[...] = (x * att[:, :, None].astype(x.dtype)).astype(o_ref.dtype)


def _pick_bt(B, C, HW, itemsize, param_bytes, budget, buffers_per_block):
    per_elem = buffers_per_block * C * HW * itemsize
    if per_elem <= 0:
        return 0
    max_bt = int((budget - 2 * param_bytes) // per_elem)
    if max_bt <= 0:
        return 0
    if max_bt >= B:
        return B
    # Largest divisor of B not exceeding max_bt (keeps every block full so no
    # partial-block handling is needed).
    for bt in range(min(max_bt, B), 0, -1):
        if B % bt == 0:
            return bt
    return 1


def _single_pass(x_flat, w1t, b1r, w2t, b2r, bt, need_bytes, capacity,
                 single_buffer_output):
    B, C, HW = x_flat.shape
    Cr = w1t.shape[1]
    itemsize = jnp.dtype(x_flat.dtype).itemsize

    if single_buffer_output:
        # v7x path: compute is ~zero, so read(i+1) still overlaps write(i)
        # with a single output buffer; footprint drops from 4x to 3x blocks.
        out_spec = pl.BlockSpec((bt, C, HW), lambda i: (i, 0, 0),
                                pipeline_mode=pl.Buffered(1))
    else:
        out_spec = pl.BlockSpec((bt, C, HW), lambda i: (i, 0, 0))

    cost = pl.CostEstimate(
        flops=int(8 * B * C * Cr + B * C * HW),
        transcendentals=int(B * C),
        bytes_accessed=int(2 * B * C * HW * itemsize),
    )

    return pl.pallas_call(
        _fused_kernel,
        out_shape=jax.ShapeDtypeStruct((B, C, HW), x_flat.dtype),
        grid_spec=pltpu.PrefetchScalarGridSpec(
            num_scalar_prefetch=0,
            grid=(B // bt,),
            in_specs=[
                pl.BlockSpec((bt, C, HW), lambda i: (i, 0, 0)),
                pl.BlockSpec((C, Cr), lambda i: (0, 0)),
                pl.BlockSpec((1, Cr), lambda i: (0, 0)),
                pl.BlockSpec((Cr, C), lambda i: (0, 0)),
                pl.BlockSpec((1, C), lambda i: (0, 0)),
            ],
            out_specs=out_spec,
        ),
        compiler_params=_mosaic_params(need_bytes, ("parallel",), capacity),
        cost_estimate=cost,
    )(x_flat, w1t, b1r, w2t, b2r)


# ---------------------------------------------------------------------------
# Two-pass fallback (very large C*HW on VMEM-limited chips, e.g. v7x).
# ---------------------------------------------------------------------------
def _make_pool_kernel(hw_total, hw_tile, n_hw):
    ragged = (hw_total % hw_tile) != 0

    def pool_kernel(x_ref, sum_ref, max_ref):
        h = pl.program_id(2)

        @pl.when(h == 0)
        def _():
            sum_ref[...] = jnp.zeros_like(sum_ref)
            max_ref[...] = jnp.full_like(max_ref, -jnp.inf)

        x = x_ref[...]                                   # (c_tile, hw_tile)

        def accumulate(x_sum, x_max):
            sum_ref[...] += jnp.sum(x_sum, axis=1, keepdims=True,
                                    dtype=jnp.float32)
            max_ref[...] = jnp.maximum(
                max_ref[...],
                jnp.max(x_max, axis=1, keepdims=True).astype(jnp.float32))

        if not ragged:
            # No mask work at all when the tile divides HW (static check).
            accumulate(x, x)
        else:
            # Unmasked fast path for interior tiles; mask only the last tile.
            @pl.when(h < n_hw - 1)
            def _():
                accumulate(x, x)

            @pl.when(h == n_hw - 1)
            def _():
                col = (jax.lax.broadcasted_iota(jnp.int32, x.shape, 1)
                       + h * hw_tile)
                valid = col < hw_total
                accumulate(jnp.where(valid, x, jnp.zeros_like(x)),
                           jnp.where(valid, x, jnp.full_like(x, -jnp.inf)))

    return pool_kernel


def _gate_kernel(x_ref, a_ref, o_ref):
    # a_ref: (c_tile, 1) per-channel scale, already in the input dtype.
    o_ref[...] = x_ref[...] * a_ref[...]


def _round_hw_tile(HW, candidate):
    """Lane-aligned spatial tile <= candidate; prefer one that divides HW."""
    candidate = int(candidate)
    if candidate >= HW:
        return HW
    candidate = max((candidate // 128) * 128, 128)
    candidate = min(candidate, HW)
    # Prefer a multiple of 128 that divides HW (no ragged tail), but don't
    # shrink the tile below half the budgeted size just to avoid the tail.
    floor = max(candidate // 2, 128)
    t = candidate
    while t >= floor:
        if HW % t == 0:
            return t
        t -= 128
    return candidate


def _two_pass(x_flat, w1, b1, w2, b2, budget, capacity, hw_tile):
    B, C, HW = x_flat.shape
    dtype = x_flat.dtype
    itemsize = jnp.dtype(dtype).itemsize

    # Tile the channel axis too: with B=1 (inference) this gives the grids a
    # second "parallel" axis so both v7x TensorCores are used. The tile must
    # be a multiple of 8 (or the full C).
    if C % 16 == 0:
        c_tile = C // 2
    else:
        c_tile = C
    n_c = C // c_tile

    # Size the two passes independently: the pool pass only double-buffers the
    # input (outputs are tiny per-channel accumulators), the gate pass buffers
    # input and output.
    if hw_tile is None:
        hw_pool = _round_hw_tile(HW, budget // (2 * c_tile * itemsize))
        hw_gate = _round_hw_tile(HW, budget // (4 * c_tile * itemsize))
    else:
        forced = int(hw_tile)
        forced = HW if forced >= HW else max((forced // 128) * 128, 128)
        hw_pool = hw_gate = forced
    n_hw_pool = pl.cdiv(HW, hw_pool)
    n_hw_gate = pl.cdiv(HW, hw_gate)

    pool_need = 2 * c_tile * hw_pool * itemsize + 4 * c_tile * 4 * 2
    gate_need = 4 * c_tile * hw_gate * itemsize + 2 * c_tile * itemsize * 2

    # Pass 1: tiled avg/max pooling (HW axis is the reduction -> "arbitrary",
    # innermost; B and C axes are independent -> "parallel").
    pool_cost = pl.CostEstimate(
        flops=int(2 * B * C * HW),
        transcendentals=0,
        bytes_accessed=int(B * C * HW * itemsize + 8 * B * C))
    sums, maxs = pl.pallas_call(
        _make_pool_kernel(HW, hw_pool, n_hw_pool),
        out_shape=(jax.ShapeDtypeStruct((B, C, 1), jnp.float32),
                   jax.ShapeDtypeStruct((B, C, 1), jnp.float32)),
        grid_spec=pltpu.PrefetchScalarGridSpec(
            num_scalar_prefetch=0,
            grid=(B, n_c, n_hw_pool),
            in_specs=[pl.BlockSpec((None, c_tile, hw_pool),
                                   lambda b, c, h: (b, c, h))],
            out_specs=(pl.BlockSpec((None, c_tile, 1), lambda b, c, h: (b, c, 0)),
                       pl.BlockSpec((None, c_tile, 1), lambda b, c, h: (b, c, 0))),
        ),
        compiler_params=_mosaic_params(
            pool_need, ("parallel", "parallel", "arbitrary"), capacity),
        cost_estimate=pool_cost,
    )(x_flat)

    # Shared MLP hoisted to plain JAX (tiny; done once per batch, not per tile).
    avg = sums[..., 0] / jnp.float32(HW)                  # (B, C)
    mx = maxs[..., 0]                                     # (B, C)
    w1f, b1f = w1.astype(jnp.float32), b1.astype(jnp.float32)
    w2f, b2f = w2.astype(jnp.float32), b2.astype(jnp.float32)

    def fc(v):
        hdn = jnp.maximum(v @ w1f.T + b1f, 0.0)
        return hdn @ w2f.T + b2f

    att = jax.nn.sigmoid(fc(avg) + fc(mx))                # (B, C) f32
    att = att.astype(dtype).reshape(B, C, 1)

    # Pass 2: tiled channel-wise gating (all grid axes independent).
    gate_cost = pl.CostEstimate(
        flops=int(B * C * HW),
        transcendentals=0,
        bytes_accessed=int(2 * B * C * HW * itemsize))
    return pl.pallas_call(
        _gate_kernel,
        out_shape=jax.ShapeDtypeStruct((B, C, HW), dtype),
        grid_spec=pltpu.PrefetchScalarGridSpec(
            num_scalar_prefetch=0,
            grid=(B, n_c, n_hw_gate),
            in_specs=[pl.BlockSpec((None, c_tile, hw_gate),
                                   lambda b, c, h: (b, c, h)),
                      pl.BlockSpec((None, c_tile, 1),
                                   lambda b, c, h: (b, c, 0))],
            out_specs=pl.BlockSpec((None, c_tile, hw_gate),
                                   lambda b, c, h: (b, c, h)),
        ),
        compiler_params=_mosaic_params(
            gate_need, ("parallel", "parallel", "parallel"), capacity),
        cost_estimate=gate_cost,
    )(x_flat, att)


# ---------------------------------------------------------------------------
# Public wrapper (NCHW in / NCHW out, PyTorch nn.Linear parameter layout).
# ---------------------------------------------------------------------------
def channel_attention(x, w1, b1, w2, b2, *,
                      vmem_budget_bytes=None,
                      force_two_pass=False,
                      hw_tile=None):
    """x: (B, C, H, W).  w1: (C//r, C), b1: (C//r,), w2: (C, C//r), b2: (C,)."""
    B, C, H, W = x.shape
    HW = H * W
    Cr = w1.shape[0]
    assert w1.shape == (Cr, C) and b1.shape == (Cr,)
    assert w2.shape == (C, Cr) and b2.shape == (C,)

    capacity = _vmem_capacity_bytes()
    budget = (_default_budget(capacity) if vmem_budget_bytes is None
              else int(vmem_budget_bytes))
    budget = int(min(budget, capacity - 8 * _MIB))

    x_flat = x.reshape(B, C, HW)
    itemsize = jnp.dtype(x.dtype).itemsize
    param_bytes = sum(int(p.size) * jnp.dtype(p.dtype).itemsize
                      for p in (w1, b1, w2, b2))

    if not force_two_pass:
        # Default: in + out blocks, each double-buffered (4 copies / block).
        bt = _pick_bt(B, C, HW, itemsize, param_bytes, budget, 4)
        single_buffer = False
        if bt == 0:
            # VMEM-limited chips (v7x): single-buffer the output (3 copies).
            bt = _pick_bt(B, C, HW, itemsize, param_bytes, budget, 3)
            single_buffer = bt > 0
        if bt > 0:
            copies = 3 if single_buffer else 4
            need = copies * bt * C * HW * itemsize + 2 * param_bytes
            # Weights pre-transposed once in the wrapper (tiny); the kernel
            # then uses plain matmuls with no in-kernel relayout.
            out = _single_pass(x_flat, w1.T, b1.reshape(1, Cr),
                               w2.T, b2.reshape(1, C),
                               bt, need, capacity, single_buffer)
            return out.reshape(B, C, H, W)

    out = _two_pass(x_flat, w1, b1, w2, b2, budget, capacity, hw_tile)
    return out.reshape(B, C, H, W)


def reference(x, w1, b1, w2, b2):
    """Pure-JAX reference matching the PyTorch forward (f32 math)."""
    xf = x.astype(jnp.float32)
    avg = jnp.mean(xf, axis=(2, 3))
    mx = jnp.max(xf, axis=(2, 3))
    w1f, b1f = w1.astype(jnp.float32), b1.astype(jnp.float32)
    w2f, b2f = w2.astype(jnp.float32), b2.astype(jnp.float32)

    def fc(v):
        h = jnp.maximum(v @ w1f.T + b1f, 0.0)
        return h @ w2f.T + b2f

    att = jax.nn.sigmoid(fc(avg) + fc(mx))
    return (att[:, :, None, None] * xf).astype(x.dtype)


if __name__ == "__main__":
    # Shapes consistent with the module: in_channels=16, ratio=8 -> hidden=2.
    B, C, H, W = 2, 16, 16, 16
    ratio = 8
    Cr = C // ratio

    key = jax.random.PRNGKey(0)
    kx, k1, k2, k3, k4, kx2 = jax.random.split(key, 6)

    x = jax.random.normal(kx, (B, C, H, W), dtype=jnp.float32)
    # PyTorch nn.Linear layout: weight (out, in), bias (out,).
    w1 = jax.random.normal(k1, (Cr, C), dtype=jnp.float32) * 0.1
    b1 = jax.random.normal(k2, (Cr,), dtype=jnp.float32) * 0.1
    w2 = jax.random.normal(k3, (C, Cr), dtype=jnp.float32) * 0.1
    b2 = jax.random.normal(k4, (C,), dtype=jnp.float32) * 0.1

    ref = reference(x, w1, b1, w2, b2)

    # 1) Default path: fused single-pass kernel (batch-tiled).
    out = jax.block_until_ready(channel_attention(x, w1, b1, w2, b2))
    assert out.shape == (B, C, H, W)
    assert jnp.allclose(out, ref, atol=1e-5, rtol=1e-5), "single-pass mismatch"

    # 2) Forced two-pass fallback, evenly tiled HW (exercises unmasked path
    #    and the tiled "parallel" channel axis).
    out2 = jax.block_until_ready(
        channel_attention(x, w1, b1, w2, b2, force_two_pass=True, hw_tile=128))
    assert jnp.allclose(out2, ref, atol=1e-5, rtol=1e-5), "two-pass mismatch"

    # 3) Forced two-pass with a ragged last spatial tile (HW=324, tile=128).
    x3 = jax.random.normal(kx2, (B, C, 18, 18), dtype=jnp.float32)
    ref3 = reference(x3, w1, b1, w2, b2)
    out3 = jax.block_until_ready(
        channel_attention(x3, w1, b1, w2, b2, force_two_pass=True, hw_tile=128))
    assert jnp.allclose(out3, ref3, atol=1e-5, rtol=1e-5), "ragged two-pass mismatch"

    print("KERNEL_OK")
</pallas_src>

<mosaic_0001>
module attributes {stable_mosaic.version = 11 : i64} {
  func.func @_fused_kernel(%arg0: i32, %arg1: memref<2x16x256xf32, #tpu.memory_space<vmem>>, %arg2: memref<16x2xf32, #tpu.memory_space<vmem>>, %arg3: memref<1x2xf32, #tpu.memory_space<vmem>>, %arg4: memref<2x16xf32, #tpu.memory_space<vmem>>, %arg5: memref<1x16xf32, #tpu.memory_space<vmem>>, %arg6: memref<2x16x256xf32, #tpu.memory_space<vmem>>) attributes {dimension_semantics = [#tpu.dimension_semantics<parallel>], iteration_bounds = array<i64: 1>, scalar_prefetch = 0 : i64, scratch_operands = 0 : i64, tpu.core_type = #tpu.core_type<tc>, window_params = [{transform_indices = @transform_0, window_bounds = array<i64: 2, 16, 256>}, {pipeline_mode = #tpu.pipeline_mode<synchronous>, transform_indices = @transform_1, window_bounds = array<i64: 16, 2>}, {pipeline_mode = #tpu.pipeline_mode<synchronous>, transform_indices = @transform_2, window_bounds = array<i64: 1, 2>}, {pipeline_mode = #tpu.pipeline_mode<synchronous>, transform_indices = @transform_3, window_bounds = array<i64: 2, 16>}, {pipeline_mode = #tpu.pipeline_mode<synchronous>, transform_indices = @transform_4, window_bounds = array<i64: 1, 16>}, {transform_indices = @transform_5, window_bounds = array<i64: 2, 16, 256>}]} {
    %c0 = arith.constant 0 : index
    %c0_0 = arith.constant 0 : index
    %c0_1 = arith.constant 0 : index
    %0 = vector.load %arg1[%c0, %c0_0, %c0_1] : memref<2x16x256xf32, #tpu.memory_space<vmem>>, vector<2x16x256xf32>
    %cst = arith.constant dense<0.000000e+00> : vector<2x16xf32>
    %1 = vector.multi_reduction <add>, %0, %cst [2] : vector<2x16x256xf32> to vector<2x16xf32>
    %cst_2 = arith.constant 2.560000e+02 : f32
    %2 = vector.broadcast %cst_2 : f32 to vector<2x16xf32>
    %3 = arith.divf %1, %2 : vector<2x16xf32>
    %cst_3 = arith.constant dense<0xFF800000> : vector<2x16xf32>
    %4 = vector.multi_reduction <maximumf>, %0, %cst_3 [2] : vector<2x16x256xf32> to vector<2x16xf32>
    %5 = tpu.concatenate %3, %4 in 0 : vector<2x16xf32>, vector<2x16xf32> -> vector<4x16xf32>
    %c0_4 = arith.constant 0 : index
    %c0_5 = arith.constant 0 : index
    %6 = vector.load %arg2[%c0_4, %c0_5] : memref<16x2xf32, #tpu.memory_space<vmem>>, vector<16x2xf32>
    %c0_6 = arith.constant 0 : index
    %c0_7 = arith.constant 0 : index
    %7 = vector.load %arg3[%c0_6, %c0_7] : memref<1x2xf32, #tpu.memory_space<vmem>>, vector<1x2xf32>
    %c0_8 = arith.constant 0 : index
    %c0_9 = arith.constant 0 : index
    %8 = vector.load %arg4[%c0_8, %c0_9] : memref<2x16xf32, #tpu.memory_space<vmem>>, vector<2x16xf32>
    %c0_10 = arith.constant 0 : index
    %c0_11 = arith.constant 0 : index
    %9 = vector.load %arg5[%c0_10, %c0_11] : memref<1x16xf32, #tpu.memory_space<vmem>>, vector<1x16xf32>
    %cst_12 = arith.constant dense<0.000000e+00> : vector<4x2xf32>
    %10 = tpu.matmul %5, %6, %cst_12 {dimension_numbers = #tpu.dot_dimension_numbers<[1], [0], [0], [1], [0, 0, 1, 1], [], []>} : vector<4x16xf32>, vector<16x2xf32>, vector<4x2xf32> -> vector<4x2xf32>
    %11 = vector.broadcast %7 : vector<1x2xf32> to vector<4x2xf32>
    %12 = arith.addf %10, %11 : vector<4x2xf32>
    %cst_13 = arith.constant 0.000000e+00 : f32
    %13 = vector.broadcast %cst_13 : f32 to vector<4x2xf32>
    %14 = arith.maximumf %12, %13 : vector<4x2xf32>
    %cst_14 = arith.constant dense<0.000000e+00> : vector<4x16xf32>
    %15 = tpu.matmul %14, %8, %cst_14 {dimension_numbers = #tpu.dot_dimension_numbers<[1], [0], [0], [1], [0, 0, 1, 1], [], []>} : vector<4x2xf32>, vector<2x16xf32>, vector<4x16xf32> -> vector<4x16xf32>
    %16 = vector.broadcast %9 : vector<1x16xf32> to vector<4x16xf32>
    %17 = arith.addf %15, %16 : vector<4x16xf32>
    %18 = vector.extract_strided_slice %17 {offsets = [0, 0], sizes = [2, 16], strides = [1, 1]} : vector<4x16xf32> to vector<2x16xf32>
    %19 = vector.extract_strided_slice %17 {offsets = [2, 0], sizes = [2, 16], strides = [1, 1]} : vector<4x16xf32> to vector<2x16xf32>
    %20 = arith.addf %18, %19 : vector<2x16xf32>
    %21 = arith.negf %20 : vector<2x16xf32>
    %22 = math.exp %21 : vector<2x16xf32>
    %cst_15 = arith.constant 1.000000e+00 : f32
    %23 = vector.broadcast %cst_15 : f32 to vector<2x16xf32>
    %24 = arith.addf %23, %22 : vector<2x16xf32>
    %25 = arith.divf %23, %24 : vector<2x16xf32>
    %26 = vector.shape_cast %25 : vector<2x16xf32> to vector<2x16x1xf32>
    %27 = vector.broadcast %26 : vector<2x16x1xf32> to vector<2x16x256xf32>
    %28 = arith.mulf %0, %27 : vector<2x16x256xf32>
    %c0_16 = arith.constant 0 : index
    %c0_17 = arith.constant 0 : index
    %c0_18 = arith.constant 0 : index
    %29 = vector.load %arg6[%c0_16, %c0_17, %c0_18] : memref<2x16x256xf32, #tpu.memory_space<vmem>>, vector<2x16x256xf32>
    tpu.vector_store %arg6[%c0_16, %c0_17, %c0_18], %28 {strides = array<i32>} : memref<2x16x256xf32, #tpu.memory_space<vmem>>, vector<2x16x256xf32>,
    return
  }
  func.func @transform_0(%arg0: i32) -> (i32, i32, i32) {
    %c0_i32 = arith.constant 0 : i32
    %c0_i32_0 = arith.constant 0 : i32
    %c0_i32_1 = arith.constant 0 : i32
    return %arg0, %c0_i32, %c0_i32_0 : i32, i32, i32
  }
  func.func @transform_1(%arg0: i32) -> (i32, i32) {
    %c0_i32 = arith.constant 0 : i32
    %c0_i32_0 = arith.constant 0 : i32
    %c0_i32_1 = arith.constant 0 : i32
    return %c0_i32, %c0_i32_0 : i32, i32
  }
  func.func @transform_2(%arg0: i32) -> (i32, i32) {
    %c0_i32 = arith.constant 0 : i32
    %c0_i32_0 = arith.constant 0 : i32
    %c0_i32_1 = arith.constant 0 : i32
    return %c0_i32, %c0_i32_0 : i32, i32
  }
  func.func @transform_3(%arg0: i32) -> (i32, i32) {
    %c0_i32 = arith.constant 0 : i32
    %c0_i32_0 = arith.constant 0 : i32
    %c0_i32_1 = arith.constant 0 : i32
    return %c0_i32, %c0_i32_0 : i32, i32
  }
  func.func @transform_4(%arg0: i32) -> (i32, i32) {
    %c0_i32 = arith.constant 0 : i32
    %c0_i32_0 = arith.constant 0 : i32
    %c0_i32_1 = arith.constant 0 : i32
    return %c0_i32, %c0_i32_0 : i32, i32
  }
  func.func @transform_5(%arg0: i32) -> (i32, i32, i32) {
    %c0_i32 = arith.constant 0 : i32
    %c0_i32_0 = arith.constant 0 : i32
    %c0_i32_1 = arith.constant 0 : i32
    return %arg0, %c0_i32, %c0_i32_0 : i32, i32, i32
  }
}

</mosaic_0001>

<llo_original>
// kernel: tpu_custom_call.1
$region0: #{tpu_custom_call.1}
  #allocation0 [shape = 'u32[]', space=smem, size = 0x4, offset = 0x4, fixed_abs, tag = 'smem constant byte address 0x4 - core index']
  #allocation1 [shape = 'u32[144,128]{1,0:T(1,128)}', space=vmem, size = 0x12000, scoped, tag = 'internal scratch']
  %s0 = inlined_call_operand.hbm [shape: f32[2,16,256], index: 0, kind: input, shape index: {}]
  %s1 = inlined_call_operand.vmem [shape: f32[16,2], index: 1, kind: input, shape index: {}]
  %s2 = inlined_call_operand.vmem [shape: f32[1,2], index: 2, kind: input, shape index: {}]
  %s3 = inlined_call_operand.vmem [shape: f32[2,16], index: 3, kind: input, shape index: {}]
  %s4 = inlined_call_operand.vmem [shape: f32[1,16], index: 4, kind: input, shape index: {}]
  %s5 = inlined_call_operand.hbm [shape: f32[2,16,256], index: 5, kind: output, shape index: {}]
  %s6 = sld [smem:[#allocation0]]
  $region34: #{tpu_custom_call.1} parent=0
    _
  %s8 = ssub.s32 1, %s6
  %s9 = scalar_select 0, %s8, %s6
  $region1: #{tpu_custom_call.1} parent=0
    #allocation2 [shape = 'u8[32768]{0}', space=vmem, size = 0x8000, scoped, tag = 'input window, operand 0, single buffered']
    #allocation3 [shape = 's32[1]{0}', space=sflag, size = 0x4, scoped, tag = 'scoped memory for tpu_custom_call.1']
    #allocation4 [shape = 's32[1]{0}', space=sflag, size = 0x4, scoped, tag = 'scoped memory for tpu_custom_call.1']
    #allocation5 [shape = 'u8[32768]{0}', space=vmem, size = 0x8000, scoped, tag = 'output window, operand 0, single buffered']
    %10 = vsyncpa [#allocation3], 0
    %11 = vsyncpa [#allocation4], 0
    // Predicated region
    $region2: #{tpu_custom_call.1} parent=1 // pred_check
      _
    $region3: #{tpu_custom_call.1} parent=1 // pred_check_branch
      %13 = sbr.rel (0) target = $region5
    $region4: #{tpu_custom_call.1} parent=1 // pred_region
      %s15 = ssub.s32 1024, 1024
      %16 = vsyncadd [#allocation3], %s15
      %s17 = sshll.u32 [#allocation2], 4
      %s18 = int_to_ptr.vmem [resolvable:$true] %s17
      %23 = dma.hbm_to_vmem [thread:$0]  %s0, 1024, %s18, [#allocation3], 256, 256, 16
    $region5: #{tpu_custom_call.1} parent=1 // pred_fallthru
      _
    // Predicated region
    $region6: #{tpu_custom_call.1} parent=1 // pred_check
      _
    $region7: #{tpu_custom_call.1} parent=1 // pred_check_branch
      %25 = sbr.rel (0) target = $region9
    $region8: #{tpu_custom_call.1} parent=1 // pred_region
      _
    $region9: #{tpu_custom_call.1} parent=1 // pred_fallthru
      _
    // Predicated region
    $region10: #{tpu_custom_call.1} parent=1 // pred_check
      _
    $region11: #{tpu_custom_call.1} parent=1 // pred_check_branch
      %27 = sbr.rel (0) target = $region13
    $region12: #{tpu_custom_call.1} parent=1 // pred_region
      _
    $region13: #{tpu_custom_call.1} parent=1 // pred_fallthru
      _
    // Predicated region
    $region14: #{tpu_custom_call.1} parent=1 // pred_check
      _
    $region15: #{tpu_custom_call.1} parent=1 // pred_check_branch
      %29 = sbr.rel (0) target = $region17
    $region16: #{tpu_custom_call.1} parent=1 // pred_region
      _
    $region17: #{tpu_custom_call.1} parent=1 // pred_fallthru
      _
    // Predicated region
    $region18: #{tpu_custom_call.1} parent=1 // pred_check
      _
    $region19: #{tpu_custom_call.1} parent=1 // pred_check_branch
      %31 = sbr.rel (0) target = $region21
    $region20: #{tpu_custom_call.1} parent=1 // pred_region
      _
    $region21: #{tpu_custom_call.1} parent=1 // pred_fallthru
      _
    // Predicated region
    $region22: #{tpu_custom_call.1} parent=1 // pred_check
      _
    $region23: #{tpu_custom_call.1} parent=1 // pred_check_branch
      %33 = sbr.rel (0) target = $region25
    $region24: #{tpu_custom_call.1} parent=1 // pred_region
      %34 = dma.done [#allocation3], 1024
    $region25: #{tpu_custom_call.1} parent=1 // pred_fallthru
      _
    %v35 = vld [vmem:[#allocation2] sm:$0xff]
    %v36 = vld [vmem:[#allocation2 + $0x8] sm:$0xff]
    %v37 = vld [vmem:[#allocation2 + $0x10] sm:$0xff]
    %v38 = vld [vmem:[#allocation2 + $0x18] sm:$0xff]
    %v39 = vld [vmem:[#allocation2 + $0x20] sm:$0xff]
    %v40 = vld [vmem:[#allocation2 + $0x28] sm:$0xff]
    %v41 = vld [vmem:[#allocation2 + $0x30] sm:$0xff]
    %v42 = vld [vmem:[#allocation2 + $0x38] sm:$0xff]
    %v43 = vadd.f32 %v35, %v36
    %44 = vadd.xlane.f32.xlu0 %v43
    %v45 = vpop.xlane.xlu0 %44
    %v46 = vadd.f32 %v37, %v38
    %47 = vadd.xlane.f32.xlu0 %v46
    %v48 = vpop.xlane.xlu0 %47
    %v49 = vadd.f32 %v39, %v40
    %50 = vadd.xlane.f32.xlu0 %v49
    %v51 = vpop.xlane.xlu0 %50
    %v52 = vadd.f32 %v41, %v42
    %53 = vadd.xlane.f32.xlu0 %v52
    %v54 = vpop.xlane.xlu0 %53
    %v55 = vrcp.pop 256.0
    %v56 = vmul.f32 %v45, %v55
    %v57 = vmul.f32 %v48, %v55
    %v58 = vmul.f32 %v51, %v55
    %v59 = vmul.f32 %v54, %v55
    %v60 = vmax.f32 %v35, %v36
    %61 = vmax.xlane.f32.xlu0 %v60
    %v62 = vpop.xlane.xlu0 %61
    %v63 = vmax.f32 %v37, %v38
    %64 = vmax.xlane.f32.xlu0 %v63
    %v65 = vpop.xlane.xlu0 %64
    %v66 = vmax.f32 %v39, %v40
    %67 = vmax.xlane.f32.xlu0 %v66
    %v68 = vpop.xlane.xlu0 %67
    %v69 = vmax.f32 %v41, %v42
    %70 = vmax.xlane.f32.xlu0 %v69
    %v71 = vpop.xlane.xlu0 %70
    %v76 = vlaneseq
    %v77 = vand.u32 %v76, 127
    %v78 = vlaneseq
    %v79 = vshrl.u32 %v78, 7
    %v80 = vsub.s32 %v77, %v79
    %v81 = vrot.slane %v56, %v80
    %v82 = vadd.s32 %v77, 4294967288
    %v83 = vlaneseq
    %v84 = vshrl.u32 %v83, 7
    %v85 = vsub.s32 %v82, %v84
    %v86 = vrot.slane %v57, %v85
    %vm87 = vcmask 130112
    %v88 = vsel %vm87, %v86, %v81
    %v89 = vlaneseq
    %v90 = vshrl.u32 %v89, 7
    %v91 = vsub.s32 %v77, %v90
    %v92 = vrot.slane %v58, %v91
    %v93 = vlaneseq
    %v94 = vshrl.u32 %v93, 7
    %v95 = vsub.s32 %v82, %v94
    %v96 = vrot.slane %v59, %v95
    %v97 = vsel %vm87, %v96, %v92
    %vm98 = vcmask 1041409
    %v99 = vsel %vm98, %v97, %v88
    %v105 = vlaneseq
    %v106 = vshrl.u32 %v105, 7
    %v107 = vsub.s32 %v77, %v106
    %v108 = vrot.slane %v62, %v107
    %v109 = vlaneseq
    %v110 = vshrl.u32 %v109, 7
    %v111 = vsub.s32 %v82, %v110
    %v112 = vrot.slane %v65, %v111
    %v113 = vsel %vm87, %v112, %v108
    %v114 = vlaneseq
    %v115 = vshrl.u32 %v114, 7
    %v116 = vsub.s32 %v77, %v115
    %v117 = vrot.slane %v68, %v116
    %v118 = vlaneseq
    %v119 = vshrl.u32 %v118, 7
    %v120 = vsub.s32 %v82, %v119
    %v121 = vrot.slane %v71, %v120
    %v122 = vsel %vm87, %v121, %v117
    %vm123 = vcmask 1043459
    %v124 = vsel %vm123, %v122, %v113
    %vm126 = vcmask 1041408
    %v127 = vsel %vm126, %v99, %v124
    %v128 = vld [vmem:[%s1] sm:$0xff]
    %v129 = vld [vmem:[%s1 + $0x8] sm:$0xff]
    %v130 = vld [vmem:[%s2] sm:$0x1]
    %v131 = vld [vmem:[%s3] sm:$0x3]
    %v132 = vld [vmem:[%s4] sm:$0x1]
    %v134 = vlaneseq
    %v135 = vshrl.u32 %v134, 7
    %v136 = vsub.s32 0, %v135
    %v137 = vrot.slane %v130, %v136
    %vm139 = vcmask 130048
    %v141 = vsel %vm139, %v127, 0
    %143 = vmatprep.subr.mxu0 0.0
    %144 = vmatpush1.msra.mxu0 0.0
    %145 = vmatprep.subr.mxu0 0.0
    %146 = vmatpush1.msra.mxu0 0.0
    %147 = vmatprep.subr.mxu0 0.0
    %148 = vmatpush1.msra.mxu0 0.0
    %149 = vmatprep.subr.mxu0 0.0
    %150 = vmatpush1.msra.mxu0 0.0
    %151 = vmatprep.subr.mxu0 0.0
    %152 = vmatpush1.msra.mxu0 0.0
    %153 = vmatprep.subr.mxu0 0.0
    %154 = vmatpush1.msra.mxu0 0.0
    %155 = vmatprep.subr.mxu0 0.0
    %156 = vmatpush1.msra.mxu0 0.0
    %157 = vmatprep.subr.mxu0 0.0
    %158 = vmatpush1.msra.mxu0 0.0
    %159 = vmatprep.subr.mxu0 0.0
    %160 = vmatpush1.msra.mxu0 0.0
    %161 = vmatprep.subr.mxu0 0.0
    %162 = vmatpush1.msra.mxu0 0.0
    %163 = vmatprep.subr.mxu0 0.0
    %164 = vmatpush1.msra.mxu0 0.0
    %165 = vmatprep.subr.mxu0 0.0
    %166 = vmatpush1.msra.mxu0 0.0
    %167 = vmatprep.subr.mxu0 0.0
    %168 = vmatpush1.msra.mxu0 0.0
    %169 = vmatprep.subr.mxu0 0.0
    %170 = vmatpush1.msra.mxu0 0.0
    %171 = vmatprep.subr.mxu0 0.0
    %172 = vmatpush1.msra.mxu0 %v129
    %173 = vmatprep.subr.mxu0 0.0
    %174 = vmatpush1.msra.mxu0 %v128
    %175 = vmatprep.subr.mxu0 0.0
    %176 = vmatpush2.msra.mxu0 0.0
    %177 = vmatprep.subr.mxu0 0.0
    %178 = vmatpush2.msra.mxu0 0.0
    %179 = vmatprep.subr.mxu0 0.0
    %180 = vmatpush2.msra.mxu0 0.0
    %181 = vmatprep.subr.mxu0 0.0
    %182 = vmatpush2.msra.mxu0 0.0
    %183 = vmatprep.subr.mxu0 0.0
    %184 = vmatpush2.msra.mxu0 0.0
    %185 = vmatprep.subr.mxu0 0.0
    %186 = vmatpush2.msra.mxu0 0.0
    %187 = vmatprep.subr.mxu0 0.0
    %188 = vmatpush2.msra.mxu0 0.0
    %189 = vmatprep.subr.mxu0 0.0
    %190 = vmatpush2.msra.mxu0 0.0
    %191 = vmatprep.subr.mxu0 0.0
    %192 = vmatpush2.msra.mxu0 0.0
    %193 = vmatprep.subr.mxu0 0.0
    %194 = vmatpush2.msra.mxu0 0.0
    %195 = vmatprep.subr.mxu0 0.0
    %196 = vmatpush2.msra.mxu0 0.0
    %197 = vmatprep.subr.mxu0 0.0
    %198 = vmatpush2.msra.mxu0 0.0
    %199 = vmatprep.subr.mxu0 0.0
    %200 = vmatpush2.msra.mxu0 0.0
    %201 = vmatprep.subr.mxu0 0.0
    %202 = vmatpush2.msra.mxu0 0.0
    %203 = vmatprep.subr.mxu0 0.0
    %204 = vmatpush2.msra.mxu0 0.0
    %205 = vmatprep.subr.mxu0 0.0
    %206 = vmatpush2.msra.mxu0 0.0
    %207 = vmatprep.mubr.f32.mxu0 0.0
    %208 = vmatmul.mubr.f32.gmra.mxu0 %v141
    %v209 = vpop.f32.mrf.mxu0
    %v210 = vadd.f32 %v137, %v209
    %v211 = vpop.f32.mrf.mxu0
    %212 = vdwg.mxu0
    %v213 = vmax.f32 %v210, 0.0
    %v215 = vlaneseq
    %v216 = vshrl.u32 %v215, 7
    %v217 = vsub.s32 0, %v216
    %v218 = vrot.slane %v132, %v217
    %vm220 = vcmask 15360
    %v222 = vsel %vm220, %v213, 0
    %v225 = vsel %vm126, %v131, 0
    %227 = vmatprep.subr.mxu0 0.0
    %228 = vmatpush1.msra.mxu0 0.0
    %229 = vmatprep.subr.mxu0 0.0
    %230 = vmatpush1.msra.mxu0 0.0
    %231 = vmatprep.subr.mxu0 0.0
    %232 = vmatpush1.msra.mxu0 0.0
    %233 = vmatprep.subr.mxu0 0.0
    %234 = vmatpush1.msra.mxu0 0.0
    %235 = vmatprep.subr.mxu0 0.0
    %236 = vmatpush1.msra.mxu0 0.0
    %237 = vmatprep.subr.mxu0 0.0
    %238 = vmatpush1.msra.mxu0 0.0
    %239 = vmatprep.subr.mxu0 0.0
    %240 = vmatpush1.msra.mxu0 0.0
    %241 = vmatprep.subr.mxu0 0.0
    %242 = vmatpush1.msra.mxu0 0.0
    %243 = vmatprep.subr.mxu0 0.0
    %244 = vmatpush1.msra.mxu0 0.0
    %245 = vmatprep.subr.mxu0 0.0
    %246 = vmatpush1.msra.mxu0 0.0
    %247 = vmatprep.subr.mxu0 0.0
    %248 = vmatpush1.msra.mxu0 0.0
    %249 = vmatprep.subr.mxu0 0.0
    %250 = vmatpush1.msra.mxu0 0.0
    %251 = vmatprep.subr.mxu0 0.0
    %252 = vmatpush1.msra.mxu0 0.0
    %253 = vmatprep.subr.mxu0 0.0
    %254 = vmatpush1.msra.mxu0 0.0
    %255 = vmatprep.subr.mxu0 0.0
    %256 = vmatpush1.msra.mxu0 0.0
    %257 = vmatprep.subr.mxu0 0.0
    %258 = vmatpush1.msra.mxu0 %v225
    %259 = vmatprep.subr.mxu0 0.0
    %260 = vmatpush2.msra.mxu0 0.0
    %261 = vmatprep.subr.mxu0 0.0
    %262 = vmatpush2.msra.mxu0 0.0
    %263 = vmatprep.subr.mxu0 0.0
    %264 = vmatpush2.msra.mxu0 0.0
    %265 = vmatprep.subr.mxu0 0.0
    %266 = vmatpush2.msra.mxu0 0.0
    %267 = vmatprep.subr.mxu0 0.0
    %268 = vmatpush2.msra.mxu0 0.0
    %269 = vmatprep.subr.mxu0 0.0
    %270 = vmatpush2.msra.mxu0 0.0
    %271 = vmatprep.subr.mxu0 0.0
    %272 = vmatpush2.msra.mxu0 0.0
    %273 = vmatprep.subr.mxu0 0.0
    %274 = vmatpush2.msra.mxu0 0.0
    %275 = vmatprep.subr.mxu0 0.0
    %276 = vmatpush2.msra.mxu0 0.0
    %277 = vmatprep.subr.mxu0 0.0
    %278 = vmatpush2.msra.mxu0 0.0
    %279 = vmatprep.subr.mxu0 0.0
    %280 = vmatpush2.msra.mxu0 0.0
    %281 = vmatprep.subr.mxu0 0.0
    %282 = vmatpush2.msra.mxu0 0.0
    %283 = vmatprep.subr.mxu0 0.0
    %284 = vmatpush2.msra.mxu0 0.0
    %285 = vmatprep.subr.mxu0 0.0
    %286 = vmatpush2.msra.mxu0 0.0
    %287 = vmatprep.subr.mxu0 0.0
    %288 = vmatpush2.msra.mxu0 0.0
    %289 = vmatprep.subr.mxu0 0.0
    %290 = vmatpush2.msra.mxu0 0.0
    %291 = vmatprep.mubr.f32.mxu0 0.0
    %292 = vmatmul.mubr.f32.gmra.mxu0 %v222
    %v293 = vpop.f32.mrf.mxu0
    %v294 = vadd.f32 %v218, %v293
    %v295 = vpop.f32.mrf.mxu0
    %296 = vdwg.mxu0
    %v298 = vrot.slane %v294, 2
    %v300 = vadd.f32 %v294, %v298
    %v301 = vxor.u32 %v300, 2147483648
    %v302 = vmul.f32 %v301, 1.442695
    %v303 = vpow.pop %v302
    %v304 = vadd.f32 %v303, 1.0
    %v305 = vrcp.pop %v304
    %v306 = vmul.f32 1.0, %v305
    %v307 = vlaneseq
    %v308 = vshrl.u32 %v307, 7
    %v309 = vsub.s32 0, %v308
    %v310 = vrot.slane %v306, %v309
    %312 = vbcast.lane.b32.xlu0 %v310, 256
    %v313 = vpop.permute.xlu0 %312
    %s315 = sor.u32 256, 8
    %316 = vbcast.lane.b32.xlu0 %v310, %s315
    %v317 = vpop.permute.xlu0 %316
    %v318 = vlaneseq
    %v319 = vshrl.u32 %v318, 7
    %v320 = vsub.s32 1, %v319
    %v321 = vrot.slane %v306, %v320
    %323 = vbcast.lane.b32.xlu0 %v321, 256
    %v324 = vpop.permute.xlu0 %323
    %s326 = sor.u32 256, 8
    %327 = vbcast.lane.b32.xlu0 %v321, %s326
    %v328 = vpop.permute.xlu0 %327
    %v329 = vmul.f32 %v35, %v313
    %v330 = vmul.f32 %v36, %v313
    %v331 = vmul.f32 %v37, %v317
    %v332 = vmul.f32 %v38, %v317
    %v333 = vmul.f32 %v39, %v324
    %v334 = vmul.f32 %v40, %v324
    %v335 = vmul.f32 %v41, %v328
    %v336 = vmul.f32 %v42, %v328
    %337 = vst [vmem:[#allocation5] sm:$0xff] %v329
    %338 = vst [vmem:[#allocation5 + $0x8] sm:$0xff] %v330
    %339 = vst [vmem:[#allocation5 + $0x10] sm:$0xff] %v331
    %340 = vst [vmem:[#allocation5 + $0x18] sm:$0xff] %v332
    %341 = vst [vmem:[#allocation5 + $0x20] sm:$0xff] %v333
    %342 = vst [vmem:[#allocation5 + $0x28] sm:$0xff] %v334
    %343 = vst [vmem:[#allocation5 + $0x30] sm:$0xff] %v335
    %344 = vst [vmem:[#allocation5 + $0x38] sm:$0xff] %v336
    // Predicated region
    $region26: #{tpu_custom_call.1} parent=1 // pred_check
      _
    $region27: #{tpu_custom_call.1} parent=1 // pred_check_branch
      %346 = sbr.rel (0) target = $region29
    $region28: #{tpu_custom_call.1} parent=1 // pred_region
      %s348 = ssub.s32 1024, 1024
      %349 = vsyncadd [#allocation4], %s348
      %s350 = sshll.u32 [#allocation5], 4
      %s351 = int_to_ptr.vmem [resolvable:$true] %s350
      %356 = dma.vmem_to_hbm [thread:$0]  %s351, 1024, %s5, [#allocation4], 256, 256, 16
    $region29: #{tpu_custom_call.1} parent=1 // pred_fallthru
      _
    // Predicated region
    $region30: #{tpu_custom_call.1} parent=1 // pred_check
      _
    $region31: #{tpu_custom_call.1} parent=1 // pred_check_branch
      %358 = sbr.rel (0) target = $region33
    $region32: #{tpu_custom_call.1} parent=1 // pred_region
      %359 = dma.done [#allocation4], 1024
    $region33: #{tpu_custom_call.1} parent=1 // pred_fallthru
      _
    %360 = vsyncpa [#allocation3], 1
    %361 = vsyncpa [#allocation4], 1

</llo_original>
